<compile_context>
chip_gen: v6e
topology: v6e:2x2x1
jax: 0.10.0
libtpu: 0.0.40
codegen_flags: <defaults>
</compile_context>

<pallas_src>
import functools

import jax
import jax.numpy as jnp
from jax import lax
from jax.experimental import pallas as pl
from jax.experimental.pallas import tpu as pltpu


def _basic_block_kernel(x_ref, w_ref, o_ref, patch_ref, *, H, W):
    """Processes nb batch samples per grid step.

    x_ref:     (nb, Cin, H*W + 2*(W+1))  flat zero-padded input rows (VMEM)
    w_ref:     (Cout, 9*Cin)             conv weights, tap-major (VMEM, full)
    o_ref:     (nb, Cout, H*W)           output tile (NCHW, spatial flattened)
    patch_ref: (9*Cin, H*W)              VMEM scratch: im2col patch matrix
    """
    nb = x_ref.shape[0]
    cin = x_ref.shape[1]
    hw = H * W
    inv_hw = 1.0 / float(hw)

    # Lane-position masks for the horizontal taps (hoisted out of all loops).
    col = lax.broadcasted_iota(jnp.int32, (1, hw), 1) % W
    not_first_col = col != 0            # valid lanes when tap shifts left  (ddx=-1)
    not_last_col = col != (W - 1)       # valid lanes when tap shifts right (ddx=+1)

    for i in range(nb):
        # ---- im2col: 9 contiguous shifted lane-slices -> (9*Cin, HW) scratch.
        # Input rows are zero-padded by (W+1) on both ends, so the tap with
        # spatial offset (ddy, ddx) is the contiguous slice starting at
        # (W+1) + ddy*W + ddx.  Vertical out-of-image reads land in the zero
        # pad automatically; horizontal row-wrap reads are masked to zero.
        t = 0
        for ddy in (-1, 0, 1):
            for ddx in (-1, 0, 1):
                start = (W + 1) + ddy * W + ddx      # static, always >= 0
                tap = x_ref[i, :, pl.ds(start, hw)]  # (Cin, HW)
                if ddx == -1:
                    tap = jnp.where(not_first_col, tap, 0.0)
                elif ddx == 1:
                    tap = jnp.where(not_last_col, tap, 0.0)
                patch_ref[pl.ds(t * cin, cin), :] = tap
                t += 1

        # ---- fused 3x3 conv: single MXU matmul, K = 9*Cin, lane-dense output.
        conv = jnp.dot(w_ref[...], patch_ref[...],
                       preferred_element_type=jnp.float32)   # (Cout, HW) f32
        # (conv bias intentionally omitted: cancelled by InstanceNorm below)

        # ---- InstanceNorm2d (affine=False, eps=1e-5, biased var), one sweep.
        s1 = jnp.sum(conv, axis=-1, keepdims=True)            # (Cout, 1)
        s2 = jnp.sum(conv * conv, axis=-1, keepdims=True)     # (Cout, 1)
        mean = s1 * inv_hw
        var = jnp.maximum(s2 * inv_hw - mean * mean, 0.0)
        y = (conv - mean) * lax.rsqrt(var + 1e-5)

        # ---- ELU (alpha=1).
        y = jnp.where(y > 0, y, jnp.exp(y) - 1.0)

        o_ref[i] = y.astype(o_ref.dtype)                       # lane-dense store


@functools.partial(jax.jit, static_argnames=("nb",))
def basic_block(x_nchw, w, b=None, nb=None):
    """BasicBlock forward.

    x_nchw: (N, Cin, H, W); w: (Cout, Cin, 3, 3) [torch layout]; b: (Cout,) or
    None.  The conv bias is a per-channel constant that is exactly cancelled
    by the following InstanceNorm(affine=False), so it is ignored.
    """
    del b  # mathematically a no-op before InstanceNorm(affine=False)
    N, Cin, H, W = x_nchw.shape
    Cout = w.shape[0]
    HW = H * W
    pad = W + 1
    L = HW + 2 * pad

    if nb is None:
        # Keep >= 2 grid steps when possible (splits across v7x's 2 TCs);
        # otherwise take the whole batch in one step.
        nb = N // 2 if (N >= 2 and N % 2 == 0) else 1
    assert N % nb == 0, (N, nb)

    # (N, Cin, H, W) -> (N, Cin, HW) with (W+1) zeros on both sides of each row.
    x_flat = jnp.pad(x_nchw.reshape(N, Cin, HW), ((0, 0), (0, 0), (pad, pad)))
    # (Cout, Cin, 3, 3) -> (Cout, 9*Cin), tap-major to match patch assembly.
    w_r = jnp.transpose(w, (0, 2, 3, 1)).reshape(Cout, 9 * Cin)

    kernel = functools.partial(_basic_block_kernel, H=H, W=W)
    out = pl.pallas_call(
        kernel,
        out_shape=jax.ShapeDtypeStruct((N, Cout, HW), x_nchw.dtype),
        grid_spec=pltpu.PrefetchScalarGridSpec(
            num_scalar_prefetch=0,
            grid=(N // nb,),
            in_specs=[
                pl.BlockSpec((nb, Cin, L), lambda n: (n, 0, 0)),
                pl.BlockSpec((Cout, 9 * Cin), lambda n: (0, 0)),
            ],
            out_specs=pl.BlockSpec((nb, Cout, HW), lambda n: (n, 0, 0)),
            scratch_shapes=[pltpu.VMEM((9 * Cin, HW), x_nchw.dtype)],
        ),
        compiler_params=pltpu.CompilerParams(
            dimension_semantics=("parallel",)),
    )(x_flat, w_r)

    # (N, Cout, HW) -> (N, Cout, H, W): contiguous reshape, no transpose.
    return out.reshape(N, Cout, H, W)


def _reference(x_nchw, w, b):
    """Pure-JAX reference (conv+bias -> instance norm -> ELU), NCHW."""
    conv = jax.lax.conv_general_dilated(
        x_nchw.astype(jnp.float32), w.astype(jnp.float32),
        window_strides=(1, 1), padding=((1, 1), (1, 1)),
        dimension_numbers=("NCHW", "OIHW", "NCHW"))
    conv = conv + b.astype(jnp.float32)[None, :, None, None]
    mean = jnp.mean(conv, axis=(2, 3), keepdims=True)
    var = jnp.mean((conv - mean) ** 2, axis=(2, 3), keepdims=True)
    y = (conv - mean) * jax.lax.rsqrt(var + 1e-5)
    return jnp.where(y > 0, y, jnp.exp(y) - 1.0)


if __name__ == "__main__":
    key = jax.random.PRNGKey(0)
    kx, kw, kb = jax.random.split(key, 3)

    N, Cin, Cout, H, W = 2, 4, 8, 16, 16
    x = jax.random.normal(kx, (N, Cin, H, W), jnp.float32)
    # Deterministic synthetic params (torch Conv2d shapes: (Cout, Cin, 3, 3), (Cout,))
    w = 0.1 * jax.random.normal(kw, (Cout, Cin, 3, 3), jnp.float32)
    b = 0.1 * jax.random.normal(kb, (Cout,), jnp.float32)

    out = basic_block(x, w, b)
    out = jax.block_until_ready(out)

    ref = _reference(x, w, b)
    assert out.shape == (N, Cout, H, W), out.shape
    assert jnp.allclose(out, ref, atol=2e-4, rtol=2e-4), (
        float(jnp.max(jnp.abs(out - ref))))

    print("KERNEL_OK")
</pallas_src>

<mosaic_0001>
module attributes {stable_mosaic.version = 11 : i64} {
  func.func @_basic_block_kernel(%arg0: i32, %arg1: memref<1x4x290xf32, #tpu.memory_space<vmem>>, %arg2: memref<8x36xf32, #tpu.memory_space<vmem>>, %arg3: memref<1x8x256xf32, #tpu.memory_space<vmem>>, %arg4: memref<36x256xf32, #tpu.memory_space<vmem>>) attributes {dimension_semantics = [#tpu.dimension_semantics<parallel>], iteration_bounds = array<i64: 2>, scalar_prefetch = 0 : i64, scratch_operands = 1 : i64, tpu.core_type = #tpu.core_type<tc>, window_params = [{transform_indices = @transform_0, window_bounds = array<i64: 1, 4, 290>}, {pipeline_mode = #tpu.pipeline_mode<synchronous>, transform_indices = @transform_1, window_bounds = array<i64: 8, 36>}, {transform_indices = @transform_2, window_bounds = array<i64: 1, 8, 256>}]} {
    %0 = tpu.iota {dimensions = array<i32: 1>} : vector<1x256xi32>
    %c16_i32 = arith.constant 16 : i32
    %c0_i32 = arith.constant 0 : i32
    %1 = arith.cmpi eq, %c16_i32, %c0_i32 : i32
    %c1_i32 = arith.constant 1 : i32
    %2 = arith.select %1, %c1_i32, %c16_i32 : i32
    %3 = vector.broadcast %2 : i32 to vector<1x256xi32>
    %4 = arith.remsi %0, %3 : vector<1x256xi32>
    %c0_i32_0 = arith.constant 0 : i32
    %5 = vector.broadcast %c0_i32_0 : i32 to vector<1x256xi32>
    %6 = arith.cmpi ne, %4, %5 : vector<1x256xi32>
    %c0_i32_1 = arith.constant 0 : i32
    %7 = vector.broadcast %c0_i32_1 : i32 to vector<1x256xi32>
    %8 = arith.cmpi slt, %4, %7 : vector<1x256xi32>
    %c0_i32_2 = arith.constant 0 : i32
    %9 = arith.cmpi slt, %2, %c0_i32_2 : i32
    %10 = vector.broadcast %9 : i1 to vector<1x256xi1>
    %11 = vector.broadcast %10 : vector<1x256xi1> to vector<1x256xi1>
    %12 = arith.xori %8, %11 : vector<1x256xi1>
    %13 = arith.andi %12, %6 : vector<1x256xi1>
    %14 = vector.broadcast %2 : i32 to vector<1x256xi32>
    %15 = arith.addi %4, %14 : vector<1x256xi32>
    %16 = arith.select %13, %15, %4 : vector<1x256xi1>, vector<1x256xi32>
    %c0_i32_3 = arith.constant 0 : i32
    %17 = vector.broadcast %c0_i32_3 : i32 to vector<1x256xi32>
    %18 = arith.cmpi ne, %16, %17 : vector<1x256xi32>
    %c15_i32 = arith.constant 15 : i32
    %19 = vector.broadcast %c15_i32 : i32 to vector<1x256xi32>
    %20 = arith.cmpi ne, %16, %19 : vector<1x256xi32>
    %c0 = arith.constant 0 : index
    %c0_4 = arith.constant 0 : index
    %c0_5 = arith.constant 0 : index
    %21 = vector.load %arg1[%c0, %c0_4, %c0_5] : memref<1x4x290xf32, #tpu.memory_space<vmem>>, vector<1x4x256xf32>
    %22 = vector.shape_cast %21 : vector<1x4x256xf32> to vector<4x256xf32>
    %cst = arith.constant 0.000000e+00 : f32
    %23 = vector.shape_cast %18 : vector<1x256xi1> to vector<1x256xi1>
    %24 = vector.broadcast %23 : vector<1x256xi1> to vector<4x256xi1>
    %25 = vector.broadcast %cst : f32 to vector<4x256xf32>
    %26 = arith.select %24, %22, %25 : vector<4x256xi1>, vector<4x256xf32>
    %c0_6 = arith.constant 0 : index
    %c0_7 = arith.constant 0 : index
    %27 = vector.load %arg4[%c0_6, %c0_7] : memref<36x256xf32, #tpu.memory_space<vmem>>, vector<4x256xf32>
    tpu.vector_store %arg4[%c0_6, %c0_7], %26 {strides = array<i32>} : memref<36x256xf32, #tpu.memory_space<vmem>>, vector<4x256xf32>,
    %c0_8 = arith.constant 0 : index
    %c0_9 = arith.constant 0 : index
    %c1 = arith.constant 1 : index
    %28 = vector.load %arg1[%c0_8, %c0_9, %c1] : memref<1x4x290xf32, #tpu.memory_space<vmem>>, vector<1x4x256xf32>
    %29 = vector.shape_cast %28 : vector<1x4x256xf32> to vector<4x256xf32>
    %c4 = arith.constant 4 : index
    %c0_10 = arith.constant 0 : index
    %30 = vector.load %arg4[%c4, %c0_10] : memref<36x256xf32, #tpu.memory_space<vmem>>, vector<4x256xf32>
    tpu.vector_store %arg4[%c4, %c0_10], %29 {strides = array<i32>} : memref<36x256xf32, #tpu.memory_space<vmem>>, vector<4x256xf32>,
    %c0_11 = arith.constant 0 : index
    %c0_12 = arith.constant 0 : index
    %c2 = arith.constant 2 : index
    %31 = vector.load %arg1[%c0_11, %c0_12, %c2] : memref<1x4x290xf32, #tpu.memory_space<vmem>>, vector<1x4x256xf32>
    %32 = vector.shape_cast %31 : vector<1x4x256xf32> to vector<4x256xf32>
    %cst_13 = arith.constant 0.000000e+00 : f32
    %33 = vector.shape_cast %20 : vector<1x256xi1> to vector<1x256xi1>
    %34 = vector.broadcast %33 : vector<1x256xi1> to vector<4x256xi1>
    %35 = vector.broadcast %cst_13 : f32 to vector<4x256xf32>
    %36 = arith.select %34, %32, %35 : vector<4x256xi1>, vector<4x256xf32>
    %c8 = arith.constant 8 : index
    %c0_14 = arith.constant 0 : index
    %37 = vector.load %arg4[%c8, %c0_14] : memref<36x256xf32, #tpu.memory_space<vmem>>, vector<4x256xf32>
    tpu.vector_store %arg4[%c8, %c0_14], %36 {strides = array<i32>} : memref<36x256xf32, #tpu.memory_space<vmem>>, vector<4x256xf32>,
    %c0_15 = arith.constant 0 : index
    %c0_16 = arith.constant 0 : index
    %c16 = arith.constant 16 : index
    %38 = vector.load %arg1[%c0_15, %c0_16, %c16] : memref<1x4x290xf32, #tpu.memory_space<vmem>>, vector<1x4x256xf32>
    %39 = vector.shape_cast %38 : vector<1x4x256xf32> to vector<4x256xf32>
    %cst_17 = arith.constant 0.000000e+00 : f32
    %40 = vector.shape_cast %18 : vector<1x256xi1> to vector<1x256xi1>
    %41 = vector.broadcast %40 : vector<1x256xi1> to vector<4x256xi1>
    %42 = vector.broadcast %cst_17 : f32 to vector<4x256xf32>
    %43 = arith.select %41, %39, %42 : vector<4x256xi1>, vector<4x256xf32>
    %c12 = arith.constant 12 : index
    %c0_18 = arith.constant 0 : index
    %44 = vector.load %arg4[%c12, %c0_18] : memref<36x256xf32, #tpu.memory_space<vmem>>, vector<4x256xf32>
    tpu.vector_store %arg4[%c12, %c0_18], %43 {strides = array<i32>} : memref<36x256xf32, #tpu.memory_space<vmem>>, vector<4x256xf32>,
    %c0_19 = arith.constant 0 : index
    %c0_20 = arith.constant 0 : index
    %c17 = arith.constant 17 : index
    %45 = vector.load %arg1[%c0_19, %c0_20, %c17] : memref<1x4x290xf32, #tpu.memory_space<vmem>>, vector<1x4x256xf32>
    %46 = vector.shape_cast %45 : vector<1x4x256xf32> to vector<4x256xf32>
    %c16_21 = arith.constant 16 : index
    %c0_22 = arith.constant 0 : index
    %47 = vector.load %arg4[%c16_21, %c0_22] : memref<36x256xf32, #tpu.memory_space<vmem>>, vector<4x256xf32>
    tpu.vector_store %arg4[%c16_21, %c0_22], %46 {strides = array<i32>} : memref<36x256xf32, #tpu.memory_space<vmem>>, vector<4x256xf32>,
    %c0_23 = arith.constant 0 : index
    %c0_24 = arith.constant 0 : index
    %c18 = arith.constant 18 : index
    %48 = vector.load %arg1[%c0_23, %c0_24, %c18] : memref<1x4x290xf32, #tpu.memory_space<vmem>>, vector<1x4x256xf32>
    %49 = vector.shape_cast %48 : vector<1x4x256xf32> to vector<4x256xf32>
    %cst_25 = arith.constant 0.000000e+00 : f32
    %50 = vector.shape_cast %20 : vector<1x256xi1> to vector<1x256xi1>
    %51 = vector.broadcast %50 : vector<1x256xi1> to vector<4x256xi1>
    %52 = vector.broadcast %cst_25 : f32 to vector<4x256xf32>
    %53 = arith.select %51, %49, %52 : vector<4x256xi1>, vector<4x256xf32>
    %c20 = arith.constant 20 : index
    %c0_26 = arith.constant 0 : index
    %54 = vector.load %arg4[%c20, %c0_26] : memref<36x256xf32, #tpu.memory_space<vmem>>, vector<4x256xf32>
    tpu.vector_store %arg4[%c20, %c0_26], %53 {strides = array<i32>} : memref<36x256xf32, #tpu.memory_space<vmem>>, vector<4x256xf32>,
    %c0_27 = arith.constant 0 : index
    %c0_28 = arith.constant 0 : index
    %c32 = arith.constant 32 : index
    %55 = vector.load %arg1[%c0_27, %c0_28, %c32] : memref<1x4x290xf32, #tpu.memory_space<vmem>>, vector<1x4x256xf32>
    %56 = vector.shape_cast %55 : vector<1x4x256xf32> to vector<4x256xf32>
    %cst_29 = arith.constant 0.000000e+00 : f32
    %57 = vector.shape_cast %18 : vector<1x256xi1> to vector<1x256xi1>
    %58 = vector.broadcast %57 : vector<1x256xi1> to vector<4x256xi1>
    %59 = vector.broadcast %cst_29 : f32 to vector<4x256xf32>
    %60 = arith.select %58, %56, %59 : vector<4x256xi1>, vector<4x256xf32>
    %c24 = arith.constant 24 : index
    %c0_30 = arith.constant 0 : index
    %61 = vector.load %arg4[%c24, %c0_30] : memref<36x256xf32, #tpu.memory_space<vmem>>, vector<4x256xf32>
    tpu.vector_store %arg4[%c24, %c0_30], %60 {strides = array<i32>} : memref<36x256xf32, #tpu.memory_space<vmem>>, vector<4x256xf32>,
    %c0_31 = arith.constant 0 : index
    %c0_32 = arith.constant 0 : index
    %c33 = arith.constant 33 : index
    %62 = vector.load %arg1[%c0_31, %c0_32, %c33] : memref<1x4x290xf32, #tpu.memory_space<vmem>>, vector<1x4x256xf32>
    %63 = vector.shape_cast %62 : vector<1x4x256xf32> to vector<4x256xf32>
    %c28 = arith.constant 28 : index
    %c0_33 = arith.constant 0 : index
    %64 = vector.load %arg4[%c28, %c0_33] : memref<36x256xf32, #tpu.memory_space<vmem>>, vector<4x256xf32>
    tpu.vector_store %arg4[%c28, %c0_33], %63 {strides = array<i32>} : memref<36x256xf32, #tpu.memory_space<vmem>>, vector<4x256xf32>,
    %c0_34 = arith.constant 0 : index
    %c0_35 = arith.constant 0 : index
    %c34 = arith.constant 34 : index
    %65 = vector.load %arg1[%c0_34, %c0_35, %c34] : memref<1x4x290xf32, #tpu.memory_space<vmem>>, vector<1x4x256xf32>
    %66 = vector.shape_cast %65 : vector<1x4x256xf32> to vector<4x256xf32>
    %cst_36 = arith.constant 0.000000e+00 : f32
    %67 = vector.shape_cast %20 : vector<1x256xi1> to vector<1x256xi1>
    %68 = vector.broadcast %67 : vector<1x256xi1> to vector<4x256xi1>
    %69 = vector.broadcast %cst_36 : f32 to vector<4x256xf32>
    %70 = arith.select %68, %66, %69 : vector<4x256xi1>, vector<4x256xf32>
    %c32_37 = arith.constant 32 : index
    %c0_38 = arith.constant 0 : index
    %71 = vector.load %arg4[%c32_37, %c0_38] : memref<36x256xf32, #tpu.memory_space<vmem>>, vector<4x256xf32>
    tpu.vector_store %arg4[%c32_37, %c0_38], %70 {strides = array<i32>} : memref<36x256xf32, #tpu.memory_space<vmem>>, vector<4x256xf32>,
    %c0_39 = arith.constant 0 : index
    %c0_40 = arith.constant 0 : index
    %72 = vector.load %arg2[%c0_39, %c0_40] : memref<8x36xf32, #tpu.memory_space<vmem>>, vector<8x36xf32>
    %c0_41 = arith.constant 0 : index
    %c0_42 = arith.constant 0 : index
    %73 = vector.load %arg4[%c0_41, %c0_42] : memref<36x256xf32, #tpu.memory_space<vmem>>, vector<36x256xf32>
    %cst_43 = arith.constant dense<0.000000e+00> : vector<8x256xf32>
    %74 = tpu.matmul %72, %73, %cst_43 {dimension_numbers = #tpu.dot_dimension_numbers<[1], [0], [0], [1], [0, 0, 1, 1], [], []>} : vector<8x36xf32>, vector<36x256xf32>, vector<8x256xf32> -> vector<8x256xf32>
    %cst_44 = arith.constant dense<0.000000e+00> : vector<8xf32>
    %75 = vector.multi_reduction <add>, %74, %cst_44 [1] : vector<8x256xf32> to vector<8xf32>
    %76 = vector.shape_cast %75 : vector<8xf32> to vector<8x1xf32>
    %77 = arith.mulf %74, %74 : vector<8x256xf32>
    %cst_45 = arith.constant dense<0.000000e+00> : vector<8xf32>
    %78 = vector.multi_reduction <add>, %77, %cst_45 [1] : vector<8x256xf32> to vector<8xf32>
    %79 = vector.shape_cast %78 : vector<8xf32> to vector<8x1xf32>
    %cst_46 = arith.constant 3.906250e-03 : f32
    %80 = vector.broadcast %cst_46 : f32 to vector<8x1xf32>
    %81 = arith.mulf %76, %80 : vector<8x1xf32>
    %cst_47 = arith.constant 3.906250e-03 : f32
    %82 = vector.broadcast %cst_47 : f32 to vector<8x1xf32>
    %83 = arith.mulf %79, %82 : vector<8x1xf32>
    %84 = arith.mulf %81, %81 : vector<8x1xf32>
    %85 = arith.subf %83, %84 : vector<8x1xf32>
    %cst_48 = arith.constant 0.000000e+00 : f32
    %86 = vector.broadcast %cst_48 : f32 to vector<8x1xf32>
    %87 = arith.maximumf %85, %86 : vector<8x1xf32>
    %88 = vector.broadcast %81 : vector<8x1xf32> to vector<8x256xf32>
    %89 = arith.subf %74, %88 : vector<8x256xf32>
    %cst_49 = arith.constant 9.99999974E-6 : f32
    %90 = vector.broadcast %cst_49 : f32 to vector<8x1xf32>
    %91 = arith.addf %87, %90 : vector<8x1xf32>
    %92 = math.rsqrt %91 : vector<8x1xf32>
    %93 = vector.broadcast %92 : vector<8x1xf32> to vector<8x256xf32>
    %94 = arith.mulf %89, %93 : vector<8x256xf32>
    %cst_50 = arith.constant 0.000000e+00 : f32
    %95 = vector.broadcast %cst_50 : f32 to vector<8x256xf32>
    %96 = arith.cmpf ogt, %94, %95 : vector<8x256xf32>
    %97 = math.exp %94 : vector<8x256xf32>
    %cst_51 = arith.constant 1.000000e+00 : f32
    %98 = vector.broadcast %cst_51 : f32 to vector<8x256xf32>
    %99 = arith.subf %97, %98 : vector<8x256xf32>
    %100 = arith.select %96, %94, %99 : vector<8x256xi1>, vector<8x256xf32>
    %c0_52 = arith.constant 0 : index
    %c0_53 = arith.constant 0 : index
    %c0_54 = arith.constant 0 : index
    %101 = vector.load %arg3[%c0_52, %c0_53, %c0_54] : memref<1x8x256xf32, #tpu.memory_space<vmem>>, vector<1x8x256xf32>
    %102 = vector.shape_cast %101 : vector<1x8x256xf32> to vector<8x256xf32>
    %103 = vector.shape_cast %100 : vector<8x256xf32> to vector<1x8x256xf32>
    tpu.vector_store %arg3[%c0_52, %c0_53, %c0_54], %103 {strides = array<i32>} : memref<1x8x256xf32, #tpu.memory_space<vmem>>, vector<1x8x256xf32>,
    return
  }
  func.func @transform_0(%arg0: i32) -> (i32, i32, i32) {
    %c0_i32 = arith.constant 0 : i32
    %c0_i32_0 = arith.constant 0 : i32
    %c0_i32_1 = arith.constant 0 : i32
    return %arg0, %c0_i32, %c0_i32_0 : i32, i32, i32
  }
  func.func @transform_1(%arg0: i32) -> (i32, i32) {
    %c0_i32 = arith.constant 0 : i32
    %c0_i32_0 = arith.constant 0 : i32
    %c0_i32_1 = arith.constant 0 : i32
    return %c0_i32, %c0_i32_0 : i32, i32
  }
  func.func @transform_2(%arg0: i32) -> (i32, i32, i32) {
    %c0_i32 = arith.constant 0 : i32
    %c0_i32_0 = arith.constant 0 : i32
    %c0_i32_1 = arith.constant 0 : i32
    return %arg0, %c0_i32, %c0_i32_0 : i32, i32, i32
  }
}

</mosaic_0001>

<llo_original>
// kernel: basic_block.1
$region0: #{basic_block.1}
  #allocation0 [shape = 'u32[]', space=smem, size = 0x4, offset = 0x4, fixed_abs, tag = 'smem constant byte address 0x4 - core index']
  #allocation1 [shape = 'u32[144,128]{1,0:T(1,128)}', space=vmem, size = 0x12000, scoped, tag = 'internal scratch']
  #allocation2 [shape = 'f32[36,256]{1,0:T(8,128)}', space=vmem, size = 0xa000, scoped, tag = 'scratch operand']
  %s0 = inlined_call_operand.vmem [shape: f32[2,4,290], index: 0, kind: input, shape index: {}]
  %s1 = inlined_call_operand.vmem [shape: f32[8,36], index: 1, kind: input, shape index: {}]
  %s2 = inlined_call_operand.vmem [shape: f32[2,8,256], index: 2, kind: output, shape index: {}]
  %s3 = sld [smem:[#allocation0]]
  $region41: #{basic_block.1} parent=0
    _
  %s5 = ssub.s32 1, %s3
  %s6 = scalar_select 0, %s5, %s3
  loop: start=0, step=1, limit=4
  $region2: #{basic_block.1} parent=0 // loop_pre_header
    _
  $region3: #{basic_block.1} parent=0 // loop_header
    %s8 = sphi 0, %s12
    %p9 = scmp.ge.s32.totalorder %s8, 4
    %s18 = sphi 0, %s20
    %s21 = sphi 0, %s18
    %s22 = sphi 0, %s21
    %s38 = sphi 0, %s22
    %s42 = sphi 0, %s42
    %s44 = sphi 0, %s42
    %s45 = sphi 0, %s44
    %s59 = sphi 0, %s45
    %s65 = sphi 0, %s67
    %s68 = sphi 0, %s65
    %s69 = sphi 0, %s68
    %s85 = sphi 0, %s69
  $region4: #{basic_block.1} parent=0 // loop_header_branch
    %11 = sbr.rel (%p9) target = $region8
  $region5: #{basic_block.1} parent=0 // loop_body
    %s13 = ssub.s32 %s8, 1
    %s14 = ssub.s32 %s8, 2
    %s15 = sadd.s32 %s8, 1
    %s16 = ssub.s32 %s8, %s15
    %p17 = scmp.eq.s32.totalorder %s16, 0
    %s19 = sadd.s32 %s18, 1
    %s20 = scalar_select %p17, %s18, %s19
    %p23 = pneg %p17
    %p24 = scmp.eq.s32.totalorder %s8, 1
    %p25 = por %p23, %p24
    %p26 = scmp.ne.s32.totalorder %s18, %s21
    %p27 = scmp.eq.s32.totalorder %s8, 0
    %p28 = por %p26, %p27
    %p29 = scmp.ne.s32.totalorder %s18, %s21
    %p30 = scmp.eq.s32.totalorder %s13, 1
    %p31 = por %p29, %p30
    %p32 = scmp.ne.s32.totalorder %s21, %s22
    %p33 = scmp.eq.s32.totalorder %s13, 0
    %p34 = por %p32, %p33
    %p35 = scmp.ne.s32.totalorder %s21, %s22
    %p36 = scmp.eq.s32.totalorder %s14, 1
    %p37 = por %p35, %p36
    %p39 = scmp.ne.s32.totalorder %s22, %s38
    %p40 = scmp.eq.s32.totalorder %s14, 0
    %p41 = por %p39, %p40
    %s43 = sadd.s32 %s42, 1
    %p46 = scmp.eq.s32.totalorder %s8, 1
    %p47 = scmp.ne.s32.totalorder %s42, %s44
    %p48 = scmp.eq.s32.totalorder %s8, 0
    %p49 = por %p47, %p48
    %p50 = scmp.ne.s32.totalorder %s42, %s44
    %p51 = scmp.eq.s32.totalorder %s13, 1
    %p52 = por %p50, %p51
    %p53 = scmp.ne.s32.totalorder %s44, %s45
    %p54 = scmp.eq.s32.totalorder %s13, 0
    %p55 = por %p53, %p54
    %p56 = scmp.ne.s32.totalorder %s44, %s45
    %p57 = scmp.eq.s32.totalorder %s14, 1
    %p58 = por %p56, %p57
    %p60 = scmp.ne.s32.totalorder %s45, %s59
    %p61 = scmp.eq.s32.totalorder %s14, 0
    %p62 = por %p60, %p61
    %s63 = ssub.s32 %s8, %s15
    %p64 = scmp.eq.s32.totalorder %s63, 0
    %s66 = sadd.s32 %s65, 1
    %s67 = scalar_select %p64, %s65, %s66
    %p70 = pneg %p64
    %p71 = scmp.eq.s32.totalorder %s8, 1
    %p72 = por %p70, %p71
    %p73 = scmp.ne.s32.totalorder %s65, %s68
    %p74 = scmp.eq.s32.totalorder %s8, 0
    %p75 = por %p73, %p74
    %p76 = scmp.ne.s32.totalorder %s65, %s68
    %p77 = scmp.eq.s32.totalorder %s13, 1
    %p78 = por %p76, %p77
    %p79 = scmp.ne.s32.totalorder %s68, %s69
    %p80 = scmp.eq.s32.totalorder %s13, 0
    %p81 = por %p79, %p80
    %p82 = scmp.ne.s32.totalorder %s68, %s69
    %p83 = scmp.eq.s32.totalorder %s14, 1
    %p84 = por %p82, %p83
    %p86 = scmp.ne.s32.totalorder %s69, %s85
    %p87 = scmp.eq.s32.totalorder %s14, 0
    %p88 = por %p86, %p87
    %p89 = scmp.le.s32.totalorder 1, %s8
    %p90 = scmp.lt.s32.totalorder %s8, 3
    %p91 = pnand %p89, %p90
    %p92 = pneg %p91
    // Predicated region
    $region9: #{basic_block.1} parent=5 // pred_check
      _
    $region10: #{basic_block.1} parent=5 // pred_check_branch
      %94 = sbr.rel (%p91) target = $region12
    $region11: #{basic_block.1} parent=5 // pred_region
      %s95 = ssub.s32 %s8, 1
      // Predicated region
      $region13: #{basic_block.1} parent=11 // pred_check
        %p96 = pneg %p55
      $region14: #{basic_block.1} parent=11 // pred_check_branch
        %98 = sbr.rel (%p96) target = $region16
      $region15: #{basic_block.1} parent=11 // pred_region
        _
      $region16: #{basic_block.1} parent=11 // pred_fallthru
        _
    $region12: #{basic_block.1} parent=5 // pred_fallthru
      _
    %p99 = scmp.lt.s32.totalorder %s8, 2
    // Predicated region
    $region17: #{basic_block.1} parent=5 // pred_check
      %p100 = pneg %p99
    $region18: #{basic_block.1} parent=5 // pred_check_branch
      %102 = sbr.rel (%p100) target = $region20
    $region19: #{basic_block.1} parent=5 // pred_region
      // Predicated region
      $region21: #{basic_block.1} parent=19 // pred_check
        %p103 = pneg %p28
      $region22: #{basic_block.1} parent=19 // pred_check_branch
        %105 = sbr.rel (%p103) target = $region24
      $region23: #{basic_block.1} parent=19 // pred_region
        %p106 = scmp.lt.s32.totalorder %s8, 1
        %s107 = scalar_select %p106, %s8, 1
        %s108 = smul.addr %s107, 3
        %s109 = smul.addr %s108, 4
        %s110 = scalar_lea.vmem %s0, %s109
      $region24: #{basic_block.1} parent=19 // pred_fallthru
        _
    $region20: #{basic_block.1} parent=5 // pred_fallthru
      _
    %p111 = scmp.le.s32.totalorder 1, %s8
    %p112 = scmp.lt.s32.totalorder %s8, 3
    %p113 = pnand %p111, %p112
    %p114 = pneg %p113
    // Predicated region
    $region25: #{basic_block.1} parent=5 // pred_check
      _
    $region26: #{basic_block.1} parent=5 // pred_check_branch
      %116 = sbr.rel (%p113) target = $region28
    $region27: #{basic_block.1} parent=5 // pred_region
      %s117 = ssub.s32 %s8, 1
      %p118 = scmp.lt.s32.totalorder %s13, 1
      %s119 = scalar_select %p118, %s13, 1
      %s120 = smul.addr %s119, 3
      %s121 = smul.addr %s120, 4
      %s122 = scalar_lea.vmem %s0, %s121
      %p123 = pneg %p34
      %p124 = pneg %p31
      %p125 = pneg %p55
      %p126 = pneg %p52
      %p127 = pneg %p81
      %p128 = pneg %p78
      %p129 = scmp.lt.s32.totalorder %s13, 1
      %s130 = scalar_select %p129, %s13, 1
      %s131 = smul.addr %s130, 2
      %s132 = smul.addr %s131, 8
      %s133 = scalar_lea.vmem %s2, %s132
      %p134 = scmp.lt.s32.totalorder %s13, 1
      %s135 = scalar_select %p134, %s13, 1
      %s136 = smul.addr %s135, 3
      %s137 = smul.addr %s136, 4
      %s138 = scalar_lea.vmem %s0, %s137
      %p139 = scmp.lt.s32.totalorder %s13, 1
      %s140 = scalar_select %p139, %s13, 1
      %s141 = smul.addr %s140, 2
      %s142 = smul.addr %s141, 8
      %s143 = scalar_lea.vmem %s2, %s142
      %v144 = vlaneseq
      %v145 = vand.u32 %v144, 127
      %v146 = vadd.s32 %v145, 128
      %vm147 = vcmp.lt.s32.totalorder %v145, 0
      %v148 = vsub.s32 0, %v145
      %v149 = vsel %vm147, %v148, %v145
      %v150 = vshrl.u32 %v149, 4
      %v151 = vand.u32 %v149, 15
      %v152 = vsub.s32 0, %v151
      %v153 = vsel %vm147, %v152, %v151
      %vm154 = vcmp.lt.s32.totalorder %v146, 0
      %v155 = vsub.s32 0, %v146
      %v156 = vsel %vm154, %v155, %v146
      %v157 = vshrl.u32 %v156, 4
      %v158 = vand.u32 %v156, 15
      %v159 = vsub.s32 0, %v158
      %v160 = vsel %vm154, %v159, %v158
      %vm161 = vcmp.ne.s32.totalorder %v153, 0
      %vm162 = vcmp.ne.s32.totalorder %v160, 0
      %vm163 = vcmp.lt.s32.totalorder %v153, 0
      %vm164 = vcmp.lt.s32.totalorder %v160, 0
      %vm165 = vmand %vm163, %vm161
      %vm166 = vmand %vm164, %vm162
      %v167 = vadd.s32 %v153, 16
      %v168 = vadd.s32 %v160, 16
      %v169 = vsel %vm165, %v167, %v153
      %v170 = vsel %vm166, %v168, %v160
      %vm171 = vcmp.ne.s32.totalorder %v169, 0
      %vm172 = vcmp.ne.s32.totalorder %v170, 0
      %vm173 = vcmp.ne.s32.totalorder %v169, 15
      %vm174 = vcmp.ne.s32.totalorder %v170, 15
      %v175 = vld [vmem:[%s138] sm:$0xff]
      %v176 = vsel %vm171, 1, 0
      %v177 = vsel %vm172, 1, 0
      %vm178 = vcmp.eq.s32.totalorder %v176, 1
      %vm179 = vcmp.eq.s32.totalorder %v177, 1
      %v181 = vcombine.high %v175, %v175
      %v183 = vsel %vm178, %v175, 0.0
      %v184 = vsel %vm179, %v181, 0.0
      %185 = vst [vmem:[#allocation2] sm:$0xf] %v183
      %186 = vst [vmem:[#allocation2 + $0x8] sm:$0xf] %v184
      %v187 = vld [vmem:[%s138] sm:$0xff]
      %v188 = vld [vmem:[%s138 + $0x8] sm:$0xf]
      %v191 = vcombine.low %v187, %v187
      %v192 = vcombine.low %v188, %v188
      %193 = vrot.lane.b32.xlu0 %v191, 127
      %v194 = vpop.permute.xlu0 %193
      %195 = vrot.lane.b32.xlu0 %v187, 127
      %v196 = vpop.permute.xlu0 %195
      %197 = vrot.lane.b32.xlu0 %v192, 127
      %v198 = vpop.permute.xlu0 %197
      %vm199 = vcmask 1039360
      %v200 = vsel %vm199, %v194, %v196
      %v201 = vsel %vm199, %v196, %v198
      %204 = vst [vmem:[#allocation2] sm:$0xf0] %v200
      %205 = vst [vmem:[#allocation2 + $0x8] sm:$0xf0] %v201
      %v206 = vld [vmem:[%s138] sm:$0xff]
      %v207 = vld [vmem:[%s138 + $0x8] sm:$0xf]
      %v208 = vsel %vm173, 1, 0
      %v209 = vsel %vm174, 1, 0
      %vm210 = vcmp.eq.s32.totalorder %v208, 1
      %vm211 = vcmp.eq.s32.totalorder %v209, 1
      %v214 = vcombine.high %v206, %v206
      %215 = vrot.lane.b32.xlu0 %v206, 126
      %v216 = vpop.permute.xlu0 %215
      %217 = vrot.lane.b32.xlu0 %v214, 126
      %v218 = vpop.permute.xlu0 %217
      %219 = vrot.lane.b32.xlu0 %v207, 126
      %v220 = vpop.permute.xlu0 %219
      %vm221 = vcmask 1031168
      %v222 = vsel %vm221, %v216, %v218
      %v223 = vsel %vm221, %v218, %v220
      %v226 = vsel %vm210, %v222, 0.0
      %v227 = vsel %vm211, %v223, 0.0
      %228 = vst [vmem:[#allocation2 + $0x10] sm:$0xf] %v226
      %229 = vst [vmem:[#allocation2 + $0x18] sm:$0xf] %v227
      %v230 = vld [vmem:[%s138] sm:$0xff]
      %v231 = vld [vmem:[%s138 + $0x8] sm:$0xf]
      %v234 = vcombine.high %v230, %v230
      %235 = vrot.lane.b32.xlu0 %v230, 112
      %v236 = vpop.permute.xlu0 %235
      %237 = vrot.lane.b32.xlu0 %v234, 112
      %v238 = vpop.permute.xlu0 %237
      %239 = vrot.lane.b32.xlu0 %v231, 112
      %v240 = vpop.permute.xlu0 %239
      %vm241 = vcmask 916480
      %v242 = vsel %vm241, %v236, %v238
      %v243 = vsel %vm241, %v238, %v240
      %v246 = vsel %vm178, %v242, 0.0
      %v247 = vsel %vm179, %v243, 0.0
      %v250 = vrot.slane %v246, 4
      %v251 = vrot.slane %v247, 4
      %254 = vst [vmem:[#allocation2 + $0x10] sm:$0xf0] %v250
      %255 = vst [vmem:[#allocation2 + $0x18] sm:$0xf0] %v251
      %v256 = vld [vmem:[%s138] sm:$0xff]
      %v257 = vld [vmem:[%s138 + $0x8] sm:$0xf]
      %v260 = vcombine.high %v256, %v256
      %261 = vrot.lane.b32.xlu0 %v256, 111
      %v262 = vpop.permute.xlu0 %261
      %263 = vrot.lane.b32.xlu0 %v260, 111
      %v264 = vpop.permute.xlu0 %263
      %265 = vrot.lane.b32.xlu0 %v257, 111
      %v266 = vpop.permute.xlu0 %265
      %vm267 = vcmask 908288
      %v268 = vsel %vm267, %v262, %v264
      %v269 = vsel %vm267, %v264, %v266
      %272 = vst [vmem:[#allocation2 + $0x20] sm:$0xf] %v268
      %273 = vst [vmem:[#allocation2 + $0x28] sm:$0xf] %v269
      %v274 = vld [vmem:[%s138] sm:$0xff]
      %v275 = vld [vmem:[%s138 + $0x8] sm:$0xf]
      %v278 = vcombine.high %v274, %v274
      %279 = vrot.lane.b32.xlu0 %v274, 110
      %v280 = vpop.permute.xlu0 %279
      %281 = vrot.lane.b32.xlu0 %v278, 110
      %v282 = vpop.permute.xlu0 %281
      %283 = vrot.lane.b32.xlu0 %v275, 110
      %v284 = vpop.permute.xlu0 %283
      %vm285 = vcmask 900096
      %v286 = vsel %vm285, %v280, %v282
      %v287 = vsel %vm285, %v282, %v284
      %v290 = vsel %vm210, %v286, 0.0
      %v291 = vsel %vm211, %v287, 0.0
      %v294 = vrot.slane %v290, 4
      %v295 = vrot.slane %v291, 4
      %298 = vst [vmem:[#allocation2 + $0x20] sm:$0xf0] %v294
      %299 = vst [vmem:[#allocation2 + $0x28] sm:$0xf0] %v295
      %v300 = vld [vmem:[%s138] sm:$0xff]
      %v301 = vld [vmem:[%s138 + $0x8] sm:$0xf]
      %v304 = vcombine.high %v300, %v300
      %305 = vrot.lane.b32.xlu0 %v300, 96
      %v306 = vpop.permute.xlu0 %305
      %307 = vrot.lane.b32.xlu0 %v304, 96
      %v308 = vpop.permute.xlu0 %307
      %309 = vrot.lane.b32.xlu0 %v301, 96
      %v310 = vpop.permute.xlu0 %309
      %vm311 = vcmask 785408
      %v312 = vsel %vm311, %v306, %v308
      %v313 = vsel %vm311, %v308, %v310
      %v316 = vsel %vm178, %v312, 0.0
      %v317 = vsel %vm179, %v313, 0.0
      %318 = vst [vmem:[#allocation2 + $0x30] sm:$0xf] %v316
      %319 = vst [vmem:[#allocation2 + $0x38] sm:$0xf] %v317
      %v320 = vld [vmem:[%s138] sm:$0xff]
      %v321 = vld [vmem:[%s138 + $0x8] sm:$0xf]
      %v324 = vcombine.low %v320, %v320
      %v325 = vcombine.low %v321, %v321
      %326 = vrot.lane.b32.xlu0 %v324, 95
      %v327 = vpop.permute.xlu0 %326
      %328 = vrot.lane.b32.xlu0 %v320, 95
      %v329 = vpop.permute.xlu0 %328
      %330 = vrot.lane.b32.xlu0 %v325, 95
      %v331 = vpop.permute.xlu0 %330
      %vm332 = vcmask 777216
      %v333 = vsel %vm332, %v327, %v329
      %v334 = vsel %vm332, %v329, %v331
      %337 = vst [vmem:[#allocation2 + $0x30] sm:$0xf0] %v333
      %338 = vst [vmem:[#allocation2 + $0x38] sm:$0xf0] %v334
      %v339 = vld [vmem:[%s138] sm:$0xff]
      %v340 = vld [vmem:[%s138 + $0x8] sm:$0xf]
      %v343 = vcombine.high %v339, %v339
      %344 = vrot.lane.b32.xlu0 %v339, 94
      %v345 = vpop.permute.xlu0 %344
      %346 = vrot.lane.b32.xlu0 %v343, 94
      %v347 = vpop.permute.xlu0 %346
      %348 = vrot.lane.b32.xlu0 %v340, 94
      %v349 = vpop.permute.xlu0 %348
      %vm350 = vcmask 769024
      %v351 = vsel %vm350, %v345, %v347
      %v352 = vsel %vm350, %v347, %v349
      %v355 = vsel %vm210, %v351, 0.0
      %v356 = vsel %vm211, %v352, 0.0
      %357 = vst [vmem:[#allocation2 + $0x40] sm:$0xf] %v355
      %358 = vst [vmem:[#allocation2 + $0x48] sm:$0xf] %v356
      %v359 = vld [vmem:[%s1] sm:$0xff]
      %v360 = vld [vmem:[#allocation2] sm:$0xff]
      %v361 = vld [vmem:[#allocation2 + $0x8] sm:$0xff]
      %v362 = vld [vmem:[#allocation2 + $0x10] sm:$0xff]
      %v363 = vld [vmem:[#allocation2 + $0x18] sm:$0xff]
      %v364 = vld [vmem:[#allocation2 + $0x20] sm:$0xff]
      %v365 = vld [vmem:[#allocation2 + $0x28] sm:$0xff]
      %v366 = vld [vmem:[#allocation2 + $0x30] sm:$0xff]
      %v367 = vld [vmem:[#allocation2 + $0x38] sm:$0xff]
      %v368 = vld [vmem:[#allocation2 + $0x40] sm:$0xf]
      %v369 = vld [vmem:[#allocation2 + $0x48] sm:$0xf]
      %vm370 = vcmask 293888
      %v372 = vsel %vm370, %v359, 0
      %vm374 = vcmask 1043456
      %v376 = vsel %vm374, %v368, 0
      %v379 = vsel %vm374, %v369, 0
      %381 = vmatprep.subr.mxu0 0.0
      %382 = vmatpush1.msra.mxu0 0.0
      %383 = vmatprep.subr.mxu0 0.0
      %384 = vmatpush1.msra.mxu0 0.0
      %385 = vmatprep.subr.mxu0 0.0
      %386 = vmatpush1.msra.mxu0 0.0
      %387 = vmatprep.subr.mxu0 0.0
      %388 = vmatpush1.msra.mxu0 0.0
      %389 = vmatprep.subr.mxu0 0.0
      %390 = vmatpush1.msra.mxu0 0.0
      %391 = vmatprep.subr.mxu0 0.0
      %392 = vmatpush1.msra.mxu0 0.0
      %393 = vmatprep.subr.mxu0 0.0
      %394 = vmatpush1.msra.mxu0 0.0
      %395 = vmatprep.subr.mxu0 0.0
      %396 = vmatpush1.msra.mxu0 0.0
      %397 = vmatprep.subr.mxu0 0.0
      %398 = vmatpush1.msra.mxu0 0.0
      %399 = vmatprep.subr.mxu0 0.0
      %400 = vmatpush1.msra.mxu0 0.0
      %401 = vmatprep.subr.mxu0 0.0
      %402 = vmatpush1.msra.mxu0 0.0
      %403 = vmatprep.subr.mxu0 %v379
      %404 = vmatpush1.msra.mxu0 %v376
      %405 = vmatprep.subr.mxu0 %v367
      %406 = vmatpush1.msra.mxu0 %v366
      %407 = vmatprep.subr.mxu0 %v365
      %408 = vmatpush1.msra.mxu0 %v364
      %409 = vmatprep.subr.mxu0 %v363
      %410 = vmatpush1.msra.mxu0 %v362
      %411 = vmatprep.subr.mxu0 %v361
      %412 = vmatpush1.msra.mxu0 %v360
      %413 = vmatprep.subr.mxu0 0.0
      %414 = vmatpush2.msra.mxu0 0.0
      %415 = vmatprep.subr.mxu0 0.0
      %416 = vmatpush2.msra.mxu0 0.0
      %417 = vmatprep.subr.mxu0 0.0
      %418 = vmatpush2.msra.mxu0 0.0
      %419 = vmatprep.subr.mxu0 0.0
      %420 = vmatpush2.msra.mxu0 0.0
      %421 = vmatprep.subr.mxu0 0.0
      %422 = vmatpush2.msra.mxu0 0.0
      %423 = vmatprep.subr.mxu0 0.0
      %424 = vmatpush2.msra.mxu0 0.0
      %425 = vmatprep.subr.mxu0 0.0
      %426 = vmatpush2.msra.mxu0 0.0
      %427 = vmatprep.subr.mxu0 0.0
      %428 = vmatpush2.msra.mxu0 0.0
      %429 = vmatprep.subr.mxu0 0.0
      %430 = vmatpush2.msra.mxu0 0.0
      %431 = vmatprep.subr.mxu0 0.0
      %432 = vmatpush2.msra.mxu0 0.0
      %433 = vmatprep.subr.mxu0 0.0
      %434 = vmatpush2.msra.mxu0 0.0
      %435 = vmatprep.subr.mxu0 0.0
      %436 = vmatpush2.msra.mxu0 0.0
      %437 = vmatprep.subr.mxu0 0.0
      %438 = vmatpush2.msra.mxu0 0.0
      %439 = vmatprep.subr.mxu0 0.0
      %440 = vmatpush2.msra.mxu0 0.0
      %441 = vmatprep.subr.mxu0 0.0
      %442 = vmatpush2.msra.mxu0 0.0
      %443 = vmatprep.subr.mxu0 0.0
      %444 = vmatpush2.msra.mxu0 0.0
      %445 = vmatprep.mubr.f32.mxu0 0.0
      %446 = vmatmul.mubr.f32.gmra.mxu0 %v372
      %v447 = vpop.f32.mrf.mxu0
      %v448 = vadd.f32 0.0, %v447
      %v449 = vpop.f32.mrf.mxu0
      %v450 = vadd.f32 0.0, %v449
      %451 = vdwg.mxu0
      %v452 = vadd.f32 %v448, %v450
      %453 = vadd.xlane.f32.xlu0 %v452
      %v454 = vpop.xlane.xlu0 %453
      %v455 = vmul.f32 %v448, %v448
      %v456 = vmul.f32 %v450, %v450
      %v457 = vadd.f32 %v455, %v456
      %458 = vadd.xlane.f32.xlu0 %v457
      %v459 = vpop.xlane.xlu0 %458
      %v460 = vmul.f32 %v454, 0.00390625
      %v461 = vmul.f32 %v459, 0.00390625
      %v462 = vmul.f32 %v460, %v460
      %v463 = vsub.f32 %v461, %v462
      %v464 = vmax.f32 %v463, 0.0
      %v465 = vsub.f32 %v448, %v460
      %v466 = vsub.f32 %v450, %v460
      %v467 = vadd.f32 %v464, 1e-05
      %v468 = vrsqrt.pop %v467
      %v469 = vmul.f32 %v465, %v468
      %v470 = vmul.f32 %v466, %v468
      %vm471 = vcmp.gt.f32.partialorder %v469, 0.0
      %vm472 = vcmp.gt.f32.partialorder %v470, 0.0
      %v473 = vmul.f32 %v469, 1.442695
      %v474 = vpow.pop %v473
      %v475 = vmul.f32 %v470, 1.442695
      %v476 = vpow.pop %v475
      %v477 = vsub.f32 %v474, 1.0
      %v478 = vsub.f32 %v476, 1.0
      %v479 = vsel %vm471, %v469, %v477
      %v480 = vsel %vm472, %v470, %v478
      %481 = vst [vmem:[%s143] sm:$0xff] %v479
      %482 = vst [vmem:[%s143 + $0x8] sm:$0xff] %v480
      %p483 = scmp.lt.s32.totalorder %s13, 1
      %s484 = scalar_select %p483, %s13, 1
      %s485 = smul.addr %s484, 2
      %s486 = smul.addr %s485, 8
      %s487 = scalar_lea.vmem %s2, %s486
      // Predicated region
      $region29: #{basic_block.1} parent=27 // pred_check
        %p488 = pneg %p78
      $region30: #{basic_block.1} parent=27 // pred_check_branch
        %490 = sbr.rel (%p488) target = $region32
      $region31: #{basic_block.1} parent=27 // pred_region
        _
      $region32: #{basic_block.1} parent=27 // pred_fallthru
        _
    $region28: #{basic_block.1} parent=5 // pred_fallthru
      _
    %p491 = scmp.le.s32.totalorder 2, %s8
    // Predicated region
    $region33: #{basic_block.1} parent=5 // pred_check
      %p492 = pneg %p491
    $region34: #{basic_block.1} parent=5 // pred_check_branch
      %494 = sbr.rel (%p492) target = $region36
    $region35: #{basic_block.1} parent=5 // pred_region
      %s495 = ssub.s32 %s8, 2
      // Predicated region
      $region37: #{basic_block.1} parent=35 // pred_check
        %p496 = pneg %p84
      $region38: #{basic_block.1} parent=35 // pred_check_branch
        %498 = sbr.rel (%p496) target = $region40
      $region39: #{basic_block.1} parent=35 // pred_region
        %p499 = scmp.lt.s32.totalorder %s14, 1
        %s500 = scalar_select %p499, %s14, 1
        %s501 = smul.addr %s500, 2
        %s502 = smul.addr %s501, 8
        %s503 = scalar_lea.vmem %s2, %s502
      $region40: #{basic_block.1} parent=35 // pred_fallthru
        _
    $region36: #{basic_block.1} parent=5 // pred_fallthru
      _
  $region6: #{basic_block.1} parent=0 // loop_footer
    %s12 = sadd.s32 1, %s8
  $region7: #{basic_block.1} parent=0 // loop_footer_branch
    %7 = sbr.rel target = $region3
  $region8: #{basic_block.1} parent=0 // loop_exit
    _

</llo_original>
